<compile_context>
chip_gen: v7x
topology: tpu7x:2x2x1
jax: 0.10.0
libtpu: 0.0.40
codegen_flags: <defaults>
</compile_context>

<pallas_src>
import functools

import jax
import jax.numpy as jnp
from jax.experimental import pallas as pl
from jax.experimental.pallas import tpu as pltpu


def _round_up(n, m):
    return (n + m - 1) // m * m


def _cdiv(a, b):
    return -(-a // b)


def _choose_tiling(batch, *, max_tile=2048, min_steps=4, align=16):
    """Pick (padded_batch, batch_tile).

    align=16 keeps bf16 sublane packing happy; min_steps>=4 keeps the parallel
    batch axis shardable across both v7x TensorCores and keeps the pipeline's
    prefetch/writeback overlap alive; max_tile=2048 keeps per-tile VMEM small
    enough for v5e's 16 MiB scoped default.
    """
    pb = _round_up(batch, align)
    if pb <= min_steps * align:
        return pb, pb                       # tiny batch: single tile
    steps = max(_cdiv(pb, max_tile), min_steps)
    tb = _round_up(_cdiv(pb, steps), align)
    pb = _round_up(pb, tb)
    return pb, tb


def _vae_kernel(
    x_ref, eps_ref,
    w1_ref, b1_ref,          # encoder layer 0: (2*input_dim) -> 128
    w2_ref, b2_ref,          # encoder layer 2: 128 -> 64
    wmv_ref, bmv_ref,        # fused [mu | logvar] head: 64 -> 2*latent
    wd1_ref, bd1_ref,        # decoder layer 0: latent -> 64
    wd2_ref, bd2_ref,        # decoder layer 2: 64 -> 128
    wd3_ref, bd3_ref,        # decoder layer 4: 128 -> 2*input_dim (native width)
    dec_ref, mu_ref, logvar_ref,
    *, latent_dim,
):
    bf16 = jnp.bfloat16
    x = x_ref[...]                           # already bf16 (cast in the wrapper)

    # ---- encoder ----
    h = jnp.dot(x, w1_ref[...], preferred_element_type=jnp.float32)
    h = jnp.maximum(h + b1_ref[...], 0.0)
    h = jnp.dot(h.astype(bf16), w2_ref[...], preferred_element_type=jnp.float32)
    h = jnp.maximum(h + b2_ref[...], 0.0)

    # ---- fused latent heads: one lane-dense 2*latent-wide matmul ----
    mulv = jnp.dot(h.astype(bf16), wmv_ref[...], preferred_element_type=jnp.float32)
    mulv = mulv + bmv_ref[...]
    mu = mulv[:, :latent_dim]
    logvar = mulv[:, latent_dim:]

    # ---- reparameterize: z = mu + eps * exp(0.5 * logvar) (f32 on VPU/EUP) ----
    std = jnp.exp(0.5 * logvar)
    z = mu + eps_ref[...] * std

    # ---- decoder ----
    d = jnp.dot(z.astype(bf16), wd1_ref[...], preferred_element_type=jnp.float32)
    d = jnp.maximum(d + bd1_ref[...], 0.0)
    d = jnp.dot(d.astype(bf16), wd2_ref[...], preferred_element_type=jnp.float32)
    d = jnp.maximum(d + bd2_ref[...], 0.0)
    d = jnp.dot(d.astype(bf16), wd3_ref[...], preferred_element_type=jnp.float32)
    d = d + bd3_ref[...]

    dec_ref[...] = d.astype(dec_ref.dtype)
    mu_ref[...] = mu.astype(mu_ref.dtype)
    logvar_ref[...] = logvar.astype(logvar_ref.dtype)


def init_vae_params(key, input_dim, latent_dim=64):
    """Deterministic init mirroring the PyTorch module's layer shapes.

    Weights are stored already transposed ([in, out]) and in bf16 (MXU
    operands); biases are f32 [1, out] rows.
    """
    dims = [
        ("enc1", 2 * input_dim, 128),
        ("enc2", 128, 64),
        ("mu", 64, latent_dim),
        ("logvar", 64, latent_dim),
        ("dec1", latent_dim, 64),
        ("dec2", 64, 128),
        ("dec3", 128, 2 * input_dim),
    ]
    params = {}
    keys = jax.random.split(key, 2 * len(dims))
    for i, (name, fan_in, fan_out) in enumerate(dims):
        bound = 1.0 / jnp.sqrt(fan_in)
        w = jax.random.uniform(keys[2 * i], (fan_in, fan_out), jnp.float32,
                               -bound, bound)
        b = jax.random.uniform(keys[2 * i + 1], (1, fan_out), jnp.float32,
                               -bound, bound)
        params[f"{name}_w"] = w.astype(jnp.bfloat16)
        params[f"{name}_b"] = b
    return params


@functools.partial(jax.jit, static_argnames=("latent_dim",))
def vae_forward(x, eps, params, latent_dim=64):
    """x: [B, 2*input_dim] f32/bf16, eps: [B, latent_dim] f32 (randn of reparameterize).

    Returns (decoded [B, 2*input_dim], mu [B, latent_dim], logvar [B, latent_dim]),
    all bf16 (cast to f32 outside only if a caller requires it).
    """
    B, D2 = x.shape
    L = latent_dim

    # Fuse mu/logvar heads into one [64, 2L] weight so the head matmul is a
    # single 128-lane-dense MXU op.
    wmv = jnp.concatenate([params["mu_w"], params["logvar_w"]], axis=1)
    bmv = jnp.concatenate([params["mu_b"], params["logvar_b"]], axis=1)

    # bf16 x: halves the input DMA and drops a per-step cast; eps stays f32.
    x = x.astype(jnp.bfloat16)

    pB, tb = _choose_tiling(B)
    if pB != B:
        x = jnp.pad(x, ((0, pB - B), (0, 0)))
        eps = jnp.pad(eps, ((0, pB - B), (0, 0)))

    weights = (
        params["enc1_w"], params["enc1_b"],
        params["enc2_w"], params["enc2_b"],
        wmv, bmv,
        params["dec1_w"], params["dec1_b"],
        params["dec2_w"], params["dec2_b"],
        params["dec3_w"], params["dec3_b"],
    )

    grid = (pB // tb,)

    def batch_spec(cols):
        return pl.BlockSpec((tb, cols), lambda i: (i, 0))

    def resident_spec(w):
        # Constant index map: DMA'd once, stays resident in VMEM across steps.
        return pl.BlockSpec(w.shape, lambda i: (0, 0))

    in_specs = [batch_spec(D2), batch_spec(L)] + [resident_spec(w) for w in weights]
    out_specs = (batch_spec(D2), batch_spec(L), batch_spec(L))
    out_shape = (
        jax.ShapeDtypeStruct((pB, D2), jnp.bfloat16),   # decoded (native width)
        jax.ShapeDtypeStruct((pB, L), jnp.bfloat16),    # mu
        jax.ShapeDtypeStruct((pB, L), jnp.bfloat16),    # logvar
    )

    flops = 2 * pB * (D2 * 128 + 128 * 64 + 64 * (2 * L)
                      + L * 64 + 64 * 128 + 128 * D2)
    bytes_accessed = (
        pB * D2 * 2 + pB * L * 4                                    # x (bf16), eps (f32)
        + sum(int(w.size) * w.dtype.itemsize for w in weights)      # resident weights
        + pB * D2 * 2 + 2 * pB * L * 2                              # bf16 outputs
    )
    cost = pl.CostEstimate(flops=flops, transcendentals=pB * L,
                           bytes_accessed=bytes_accessed)

    dec, mu, logvar = pl.pallas_call(
        functools.partial(_vae_kernel, latent_dim=L),
        out_shape=out_shape,
        grid=grid,
        in_specs=in_specs,
        out_specs=out_specs,
        compiler_params=pltpu.CompilerParams(
            dimension_semantics=("parallel",)),
        cost_estimate=cost,
    )(x, eps, *weights)

    if pB != B:  # only the (cheap, leading-row) slice when padding was needed
        dec, mu, logvar = dec[:B], mu[:B], logvar[:B]
    return dec, mu, logvar


if __name__ == "__main__":
    input_dim = 16      # -> model input width is input_dim * 2 = 32
    latent_dim = 64
    batch = 8

    key = jax.random.PRNGKey(0)
    k_params, k_x, k_eps = jax.random.split(key, 3)

    params = init_vae_params(k_params, input_dim, latent_dim)
    x = jax.random.normal(k_x, (batch, 2 * input_dim), jnp.float32)
    # eps plays the role of torch.randn_like(std) in reparameterize().
    eps = jax.random.normal(k_eps, (batch, latent_dim), jnp.float32)

    decoded, mu, logvar = vae_forward(x, eps, params, latent_dim=latent_dim)
    jax.block_until_ready((decoded, mu, logvar))

    # Pure-JAX f32 reference using the same (bf16-rounded) weights, x and eps.
    def ref(x, eps, p):
        xb = x.astype(jnp.bfloat16).astype(jnp.float32)

        def lin(a, w, b):
            return a @ w.astype(jnp.float32) + b
        h = jnp.maximum(lin(xb, p["enc1_w"], p["enc1_b"]), 0.0)
        h = jnp.maximum(lin(h, p["enc2_w"], p["enc2_b"]), 0.0)
        mu_r = lin(h, p["mu_w"], p["mu_b"])
        lv_r = lin(h, p["logvar_w"], p["logvar_b"])
        z = mu_r + eps * jnp.exp(0.5 * lv_r)
        d = jnp.maximum(lin(z, p["dec1_w"], p["dec1_b"]), 0.0)
        d = jnp.maximum(lin(d, p["dec2_w"], p["dec2_b"]), 0.0)
        d = lin(d, p["dec3_w"], p["dec3_b"])
        return d, mu_r, lv_r

    d_ref, mu_ref_v, lv_ref_v = ref(x, eps, params)
    # bf16 MXU operands + bf16 output stores -> ~1e-2-level deviation vs f32 ref.
    assert jnp.allclose(decoded.astype(jnp.float32), d_ref, atol=5e-2, rtol=5e-2)
    assert jnp.allclose(mu.astype(jnp.float32), mu_ref_v, atol=5e-2, rtol=5e-2)
    assert jnp.allclose(logvar.astype(jnp.float32), lv_ref_v, atol=5e-2, rtol=5e-2)
    assert decoded.shape == (batch, 2 * input_dim)
    assert mu.shape == (batch, latent_dim) and logvar.shape == (batch, latent_dim)

    print("KERNEL_OK")
</pallas_src>

<mosaic_0001>
module attributes {stable_mosaic.version = 11 : i64} {
  func.func @_vae_kernel(%arg0: i32, %arg1: memref<16x32xbf16, #tpu.memory_space<vmem>>, %arg2: memref<16x64xf32, #tpu.memory_space<vmem>>, %arg3: memref<32x128xbf16, #tpu.memory_space<vmem>>, %arg4: memref<1x128xf32, #tpu.memory_space<vmem>>, %arg5: memref<128x64xbf16, #tpu.memory_space<vmem>>, %arg6: memref<1x64xf32, #tpu.memory_space<vmem>>, %arg7: memref<64x128xbf16, #tpu.memory_space<vmem>>, %arg8: memref<1x128xf32, #tpu.memory_space<vmem>>, %arg9: memref<64x64xbf16, #tpu.memory_space<vmem>>, %arg10: memref<1x64xf32, #tpu.memory_space<vmem>>, %arg11: memref<64x128xbf16, #tpu.memory_space<vmem>>, %arg12: memref<1x128xf32, #tpu.memory_space<vmem>>, %arg13: memref<128x32xbf16, #tpu.memory_space<vmem>>, %arg14: memref<1x32xf32, #tpu.memory_space<vmem>>, %arg15: memref<16x32xbf16, #tpu.memory_space<vmem>>, %arg16: memref<16x64xbf16, #tpu.memory_space<vmem>>, %arg17: memref<16x64xbf16, #tpu.memory_space<vmem>>) attributes {dimension_semantics = [#tpu.dimension_semantics<parallel>], iteration_bounds = array<i64: 1>, scalar_prefetch = 0 : i64, scratch_operands = 0 : i64, tpu.core_type = #tpu.core_type<tc>, window_params = [{transform_indices = @transform_0, window_bounds = array<i64: 16, 32>}, {transform_indices = @transform_1, window_bounds = array<i64: 16, 64>}, {pipeline_mode = #tpu.pipeline_mode<synchronous>, transform_indices = @transform_2, window_bounds = array<i64: 32, 128>}, {pipeline_mode = #tpu.pipeline_mode<synchronous>, transform_indices = @transform_3, window_bounds = array<i64: 1, 128>}, {pipeline_mode = #tpu.pipeline_mode<synchronous>, transform_indices = @transform_4, window_bounds = array<i64: 128, 64>}, {pipeline_mode = #tpu.pipeline_mode<synchronous>, transform_indices = @transform_5, window_bounds = array<i64: 1, 64>}, {pipeline_mode = #tpu.pipeline_mode<synchronous>, transform_indices = @transform_6, window_bounds = array<i64: 64, 128>}, {pipeline_mode = #tpu.pipeline_mode<synchronous>, transform_indices = @transform_7, window_bounds = array<i64: 1, 128>}, {pipeline_mode = #tpu.pipeline_mode<synchronous>, transform_indices = @transform_8, window_bounds = array<i64: 64, 64>}, {pipeline_mode = #tpu.pipeline_mode<synchronous>, transform_indices = @transform_9, window_bounds = array<i64: 1, 64>}, {pipeline_mode = #tpu.pipeline_mode<synchronous>, transform_indices = @transform_10, window_bounds = array<i64: 64, 128>}, {pipeline_mode = #tpu.pipeline_mode<synchronous>, transform_indices = @transform_11, window_bounds = array<i64: 1, 128>}, {pipeline_mode = #tpu.pipeline_mode<synchronous>, transform_indices = @transform_12, window_bounds = array<i64: 128, 32>}, {pipeline_mode = #tpu.pipeline_mode<synchronous>, transform_indices = @transform_13, window_bounds = array<i64: 1, 32>}, {transform_indices = @transform_14, window_bounds = array<i64: 16, 32>}, {transform_indices = @transform_15, window_bounds = array<i64: 16, 64>}, {transform_indices = @transform_16, window_bounds = array<i64: 16, 64>}]} {
    %c0 = arith.constant 0 : index
    %c0_0 = arith.constant 0 : index
    %0 = vector.load %arg1[%c0, %c0_0] : memref<16x32xbf16, #tpu.memory_space<vmem>>, vector<16x32xbf16>
    %c0_1 = arith.constant 0 : index
    %c0_2 = arith.constant 0 : index
    %1 = vector.load %arg3[%c0_1, %c0_2] : memref<32x128xbf16, #tpu.memory_space<vmem>>, vector<32x128xbf16>
    %cst = arith.constant dense<0.000000e+00> : vector<16x128xf32>
    %2 = tpu.matmul %0, %1, %cst {dimension_numbers = #tpu.dot_dimension_numbers<[1], [0], [0], [1], [0, 0, 1, 1], [], []>} : vector<16x32xbf16>, vector<32x128xbf16>, vector<16x128xf32> -> vector<16x128xf32>
    %c0_3 = arith.constant 0 : index
    %c0_4 = arith.constant 0 : index
    %3 = vector.load %arg4[%c0_3, %c0_4] : memref<1x128xf32, #tpu.memory_space<vmem>>, vector<1x128xf32>
    %4 = vector.broadcast %3 : vector<1x128xf32> to vector<16x128xf32>
    %5 = arith.addf %2, %4 : vector<16x128xf32>
    %cst_5 = arith.constant 0.000000e+00 : f32
    %6 = vector.broadcast %cst_5 : f32 to vector<16x128xf32>
    %7 = arith.maximumf %5, %6 : vector<16x128xf32>
    %8 = arith.truncf %7 : vector<16x128xf32> to vector<16x128xbf16>
    %c0_6 = arith.constant 0 : index
    %c0_7 = arith.constant 0 : index
    %9 = vector.load %arg5[%c0_6, %c0_7] : memref<128x64xbf16, #tpu.memory_space<vmem>>, vector<128x64xbf16>
    %cst_8 = arith.constant dense<0.000000e+00> : vector<16x64xf32>
    %10 = tpu.matmul %8, %9, %cst_8 {dimension_numbers = #tpu.dot_dimension_numbers<[1], [0], [0], [1], [0, 0, 1, 1], [], []>} : vector<16x128xbf16>, vector<128x64xbf16>, vector<16x64xf32> -> vector<16x64xf32>
    %c0_9 = arith.constant 0 : index
    %c0_10 = arith.constant 0 : index
    %11 = vector.load %arg6[%c0_9, %c0_10] : memref<1x64xf32, #tpu.memory_space<vmem>>, vector<1x64xf32>
    %12 = vector.broadcast %11 : vector<1x64xf32> to vector<16x64xf32>
    %13 = arith.addf %10, %12 : vector<16x64xf32>
    %cst_11 = arith.constant 0.000000e+00 : f32
    %14 = vector.broadcast %cst_11 : f32 to vector<16x64xf32>
    %15 = arith.maximumf %13, %14 : vector<16x64xf32>
    %16 = arith.truncf %15 : vector<16x64xf32> to vector<16x64xbf16>
    %c0_12 = arith.constant 0 : index
    %c0_13 = arith.constant 0 : index
    %17 = vector.load %arg7[%c0_12, %c0_13] : memref<64x128xbf16, #tpu.memory_space<vmem>>, vector<64x128xbf16>
    %cst_14 = arith.constant dense<0.000000e+00> : vector<16x128xf32>
    %18 = tpu.matmul %16, %17, %cst_14 {dimension_numbers = #tpu.dot_dimension_numbers<[1], [0], [0], [1], [0, 0, 1, 1], [], []>} : vector<16x64xbf16>, vector<64x128xbf16>, vector<16x128xf32> -> vector<16x128xf32>
    %c0_15 = arith.constant 0 : index
    %c0_16 = arith.constant 0 : index
    %19 = vector.load %arg8[%c0_15, %c0_16] : memref<1x128xf32, #tpu.memory_space<vmem>>, vector<1x128xf32>
    %20 = vector.broadcast %19 : vector<1x128xf32> to vector<16x128xf32>
    %21 = arith.addf %18, %20 : vector<16x128xf32>
    %22 = vector.extract_strided_slice %21 {offsets = [0, 0], sizes = [16, 64], strides = [1, 1]} : vector<16x128xf32> to vector<16x64xf32>
    %23 = vector.extract_strided_slice %21 {offsets = [0, 64], sizes = [16, 64], strides = [1, 1]} : vector<16x128xf32> to vector<16x64xf32>
    %cst_17 = arith.constant 5.000000e-01 : f32
    %24 = vector.broadcast %cst_17 : f32 to vector<16x64xf32>
    %25 = arith.mulf %24, %23 : vector<16x64xf32>
    %26 = math.exp %25 : vector<16x64xf32>
    %c0_18 = arith.constant 0 : index
    %c0_19 = arith.constant 0 : index
    %27 = vector.load %arg2[%c0_18, %c0_19] : memref<16x64xf32, #tpu.memory_space<vmem>>, vector<16x64xf32>
    %28 = arith.mulf %27, %26 : vector<16x64xf32>
    %29 = arith.addf %22, %28 : vector<16x64xf32>
    %30 = arith.truncf %29 : vector<16x64xf32> to vector<16x64xbf16>
    %c0_20 = arith.constant 0 : index
    %c0_21 = arith.constant 0 : index
    %31 = vector.load %arg9[%c0_20, %c0_21] : memref<64x64xbf16, #tpu.memory_space<vmem>>, vector<64x64xbf16>
    %cst_22 = arith.constant dense<0.000000e+00> : vector<16x64xf32>
    %32 = tpu.matmul %30, %31, %cst_22 {dimension_numbers = #tpu.dot_dimension_numbers<[1], [0], [0], [1], [0, 0, 1, 1], [], []>} : vector<16x64xbf16>, vector<64x64xbf16>, vector<16x64xf32> -> vector<16x64xf32>
    %c0_23 = arith.constant 0 : index
    %c0_24 = arith.constant 0 : index
    %33 = vector.load %arg10[%c0_23, %c0_24] : memref<1x64xf32, #tpu.memory_space<vmem>>, vector<1x64xf32>
    %34 = vector.broadcast %33 : vector<1x64xf32> to vector<16x64xf32>
    %35 = arith.addf %32, %34 : vector<16x64xf32>
    %cst_25 = arith.constant 0.000000e+00 : f32
    %36 = vector.broadcast %cst_25 : f32 to vector<16x64xf32>
    %37 = arith.maximumf %35, %36 : vector<16x64xf32>
    %38 = arith.truncf %37 : vector<16x64xf32> to vector<16x64xbf16>
    %c0_26 = arith.constant 0 : index
    %c0_27 = arith.constant 0 : index
    %39 = vector.load %arg11[%c0_26, %c0_27] : memref<64x128xbf16, #tpu.memory_space<vmem>>, vector<64x128xbf16>
    %cst_28 = arith.constant dense<0.000000e+00> : vector<16x128xf32>
    %40 = tpu.matmul %38, %39, %cst_28 {dimension_numbers = #tpu.dot_dimension_numbers<[1], [0], [0], [1], [0, 0, 1, 1], [], []>} : vector<16x64xbf16>, vector<64x128xbf16>, vector<16x128xf32> -> vector<16x128xf32>
    %c0_29 = arith.constant 0 : index
    %c0_30 = arith.constant 0 : index
    %41 = vector.load %arg12[%c0_29, %c0_30] : memref<1x128xf32, #tpu.memory_space<vmem>>, vector<1x128xf32>
    %42 = vector.broadcast %41 : vector<1x128xf32> to vector<16x128xf32>
    %43 = arith.addf %40, %42 : vector<16x128xf32>
    %cst_31 = arith.constant 0.000000e+00 : f32
    %44 = vector.broadcast %cst_31 : f32 to vector<16x128xf32>
    %45 = arith.maximumf %43, %44 : vector<16x128xf32>
    %46 = arith.truncf %45 : vector<16x128xf32> to vector<16x128xbf16>
    %c0_32 = arith.constant 0 : index
    %c0_33 = arith.constant 0 : index
    %47 = vector.load %arg13[%c0_32, %c0_33] : memref<128x32xbf16, #tpu.memory_space<vmem>>, vector<128x32xbf16>
    %cst_34 = arith.constant dense<0.000000e+00> : vector<16x32xf32>
    %48 = tpu.matmul %46, %47, %cst_34 {dimension_numbers = #tpu.dot_dimension_numbers<[1], [0], [0], [1], [0, 0, 1, 1], [], []>} : vector<16x128xbf16>, vector<128x32xbf16>, vector<16x32xf32> -> vector<16x32xf32>
    %c0_35 = arith.constant 0 : index
    %c0_36 = arith.constant 0 : index
    %49 = vector.load %arg14[%c0_35, %c0_36] : memref<1x32xf32, #tpu.memory_space<vmem>>, vector<1x32xf32>
    %50 = vector.broadcast %49 : vector<1x32xf32> to vector<16x32xf32>
    %51 = arith.addf %48, %50 : vector<16x32xf32>
    %52 = arith.truncf %51 : vector<16x32xf32> to vector<16x32xbf16>
    %c0_37 = arith.constant 0 : index
    %c0_38 = arith.constant 0 : index
    %53 = vector.load %arg15[%c0_37, %c0_38] : memref<16x32xbf16, #tpu.memory_space<vmem>>, vector<16x32xbf16>
    tpu.vector_store %arg15[%c0_37, %c0_38], %52 {strides = array<i32>} : memref<16x32xbf16, #tpu.memory_space<vmem>>, vector<16x32xbf16>,
    %54 = arith.truncf %22 : vector<16x64xf32> to vector<16x64xbf16>
    %c0_39 = arith.constant 0 : index
    %c0_40 = arith.constant 0 : index
    %55 = vector.load %arg16[%c0_39, %c0_40] : memref<16x64xbf16, #tpu.memory_space<vmem>>, vector<16x64xbf16>
    tpu.vector_store %arg16[%c0_39, %c0_40], %54 {strides = array<i32>} : memref<16x64xbf16, #tpu.memory_space<vmem>>, vector<16x64xbf16>,
    %56 = arith.truncf %23 : vector<16x64xf32> to vector<16x64xbf16>
    %c0_41 = arith.constant 0 : index
    %c0_42 = arith.constant 0 : index
    %57 = vector.load %arg17[%c0_41, %c0_42] : memref<16x64xbf16, #tpu.memory_space<vmem>>, vector<16x64xbf16>
    tpu.vector_store %arg17[%c0_41, %c0_42], %56 {strides = array<i32>} : memref<16x64xbf16, #tpu.memory_space<vmem>>, vector<16x64xbf16>,
    return
  }
  func.func @transform_0(%arg0: i32) -> (i32, i32) {
    %c0_i32 = arith.constant 0 : i32
    %c0_i32_0 = arith.constant 0 : i32
    return %arg0, %c0_i32 : i32, i32
  }
  func.func @transform_1(%arg0: i32) -> (i32, i32) {
    %c0_i32 = arith.constant 0 : i32
    %c0_i32_0 = arith.constant 0 : i32
    return %arg0, %c0_i32 : i32, i32
  }
  func.func @transform_2(%arg0: i32) -> (i32, i32) {
    %c0_i32 = arith.constant 0 : i32
    %c0_i32_0 = arith.constant 0 : i32
    %c0_i32_1 = arith.constant 0 : i32
    return %c0_i32, %c0_i32_0 : i32, i32
  }
  func.func @transform_3(%arg0: i32) -> (i32, i32) {
    %c0_i32 = arith.constant 0 : i32
    %c0_i32_0 = arith.constant 0 : i32
    %c0_i32_1 = arith.constant 0 : i32
    return %c0_i32, %c0_i32_0 : i32, i32
  }
  func.func @transform_4(%arg0: i32) -> (i32, i32) {
    %c0_i32 = arith.constant 0 : i32
    %c0_i32_0 = arith.constant 0 : i32
    %c0_i32_1 = arith.constant 0 : i32
    return %c0_i32, %c0_i32_0 : i32, i32
  }
  func.func @transform_5(%arg0: i32) -> (i32, i32) {
    %c0_i32 = arith.constant 0 : i32
    %c0_i32_0 = arith.constant 0 : i32
    %c0_i32_1 = arith.constant 0 : i32
    return %c0_i32, %c0_i32_0 : i32, i32
  }
  func.func @transform_6(%arg0: i32) -> (i32, i32) {
    %c0_i32 = arith.constant 0 : i32
    %c0_i32_0 = arith.constant 0 : i32
    %c0_i32_1 = arith.constant 0 : i32
    return %c0_i32, %c0_i32_0 : i32, i32
  }
  func.func @transform_7(%arg0: i32) -> (i32, i32) {
    %c0_i32 = arith.constant 0 : i32
    %c0_i32_0 = arith.constant 0 : i32
    %c0_i32_1 = arith.constant 0 : i32
    return %c0_i32, %c0_i32_0 : i32, i32
  }
  func.func @transform_8(%arg0: i32) -> (i32, i32) {
    %c0_i32 = arith.constant 0 : i32
    %c0_i32_0 = arith.constant 0 : i32
    %c0_i32_1 = arith.constant 0 : i32
    return %c0_i32, %c0_i32_0 : i32, i32
  }
  func.func @transform_9(%arg0: i32) -> (i32, i32) {
    %c0_i32 = arith.constant 0 : i32
    %c0_i32_0 = arith.constant 0 : i32
    %c0_i32_1 = arith.constant 0 : i32
    return %c0_i32, %c0_i32_0 : i32, i32
  }
  func.func @transform_10(%arg0: i32) -> (i32, i32) {
    %c0_i32 = arith.constant 0 : i32
    %c0_i32_0 = arith.constant 0 : i32
    %c0_i32_1 = arith.constant 0 : i32
    return %c0_i32, %c0_i32_0 : i32, i32
  }
  func.func @transform_11(%arg0: i32) -> (i32, i32) {
    %c0_i32 = arith.constant 0 : i32
    %c0_i32_0 = arith.constant 0 : i32
    %c0_i32_1 = arith.constant 0 : i32
    return %c0_i32, %c0_i32_0 : i32, i32
  }
  func.func @transform_12(%arg0: i32) -> (i32, i32) {
    %c0_i32 = arith.constant 0 : i32
    %c0_i32_0 = arith.constant 0 : i32
    %c0_i32_1 = arith.constant 0 : i32
    return %c0_i32, %c0_i32_0 : i32, i32
  }
  func.func @transform_13(%arg0: i32) -> (i32, i32) {
    %c0_i32 = arith.constant 0 : i32
    %c0_i32_0 = arith.constant 0 : i32
    %c0_i32_1 = arith.constant 0 : i32
    return %c0_i32, %c0_i32_0 : i32, i32
  }
  func.func @transform_14(%arg0: i32) -> (i32, i32) {
    %c0_i32 = arith.constant 0 : i32
    %c0_i32_0 = arith.constant 0 : i32
    return %arg0, %c0_i32 : i32, i32
  }
  func.func @transform_15(%arg0: i32) -> (i32, i32) {
    %c0_i32 = arith.constant 0 : i32
    %c0_i32_0 = arith.constant 0 : i32
    return %arg0, %c0_i32 : i32, i32
  }
  func.func @transform_16(%arg0: i32) -> (i32, i32) {
    %c0_i32 = arith.constant 0 : i32
    %c0_i32_0 = arith.constant 0 : i32
    return %arg0, %c0_i32 : i32, i32
  }
}

</mosaic_0001>

<llo_original>
// kernel: vae_forward.1
$region0: #{vae_forward.1}
  #allocation0 [shape = 'u32[]', space=smem, size = 0x4, offset = 0x4, fixed_abs, tag = 'smem constant byte address 0x4 - core index']
  #allocation1 [shape = 'u32[144,128]{1,0:T(1,128)}', space=vmem, size = 0x12000, scoped, tag = 'internal scratch']
  %s0 = inlined_call_operand.vmem [shape: bf16[16,32], index: 0, kind: input, shape index: {}]
  %s1 = inlined_call_operand.vmem [shape: f32[16,64], index: 1, kind: input, shape index: {}]
  %s2 = inlined_call_operand.vmem [shape: bf16[32,128], index: 2, kind: input, shape index: {}]
  %s3 = inlined_call_operand.vmem [shape: f32[1,128], index: 3, kind: input, shape index: {}]
  %s4 = inlined_call_operand.vmem [shape: bf16[128,64], index: 4, kind: input, shape index: {}]
  %s5 = inlined_call_operand.vmem [shape: f32[1,64], index: 5, kind: input, shape index: {}]
  %s6 = inlined_call_operand.vmem [shape: bf16[64,128], index: 6, kind: input, shape index: {}]
  %s7 = inlined_call_operand.vmem [shape: f32[1,128], index: 7, kind: input, shape index: {}]
  %s8 = inlined_call_operand.vmem [shape: bf16[64,64], index: 8, kind: input, shape index: {}]
  %s9 = inlined_call_operand.vmem [shape: f32[1,64], index: 9, kind: input, shape index: {}]
  %s10 = inlined_call_operand.vmem [shape: bf16[64,128], index: 10, kind: input, shape index: {}]
  %s11 = inlined_call_operand.vmem [shape: f32[1,128], index: 11, kind: input, shape index: {}]
  %s12 = inlined_call_operand.vmem [shape: bf16[128,32], index: 12, kind: input, shape index: {}]
  %s13 = inlined_call_operand.vmem [shape: f32[1,32], index: 13, kind: input, shape index: {}]
  %s14 = inlined_call_operand.vmem [shape: bf16[16,32], index: 14, kind: output, shape index: {0}]
  %s15 = inlined_call_operand.vmem [shape: bf16[16,64], index: 15, kind: output, shape index: {1}]
  %s16 = inlined_call_operand.vmem [shape: bf16[16,64], index: 16, kind: output, shape index: {2}]
  %17 = xla_tuple %s14, %s15, %s16
  %s18 = sld [smem:[#allocation0]]
  $region82: #{vae_forward.1} parent=0
    _
  %s20 = ssub.s32 1, %s18
  %s21 = scalar_select 0, %s20, %s18
  // Predicated region
  $region2: #{vae_forward.1} parent=0 // pred_check
    _
  $region3: #{vae_forward.1} parent=0 // pred_check_branch
    %23 = sbr.rel (0) target = $region5
  $region4: #{vae_forward.1} parent=0 // pred_region
    _
  $region5: #{vae_forward.1} parent=0 // pred_fallthru
    _
  // Predicated region
  $region6: #{vae_forward.1} parent=0 // pred_check
    _
  $region7: #{vae_forward.1} parent=0 // pred_check_branch
    %25 = sbr.rel (0) target = $region9
  $region8: #{vae_forward.1} parent=0 // pred_region
    _
  $region9: #{vae_forward.1} parent=0 // pred_fallthru
    _
  // Predicated region
  $region10: #{vae_forward.1} parent=0 // pred_check
    _
  $region11: #{vae_forward.1} parent=0 // pred_check_branch
    %27 = sbr.rel (0) target = $region13
  $region12: #{vae_forward.1} parent=0 // pred_region
    _
  $region13: #{vae_forward.1} parent=0 // pred_fallthru
    _
  // Predicated region
  $region14: #{vae_forward.1} parent=0 // pred_check
    _
  $region15: #{vae_forward.1} parent=0 // pred_check_branch
    %29 = sbr.rel (0) target = $region17
  $region16: #{vae_forward.1} parent=0 // pred_region
    _
  $region17: #{vae_forward.1} parent=0 // pred_fallthru
    _
  // Predicated region
  $region18: #{vae_forward.1} parent=0 // pred_check
    _
  $region19: #{vae_forward.1} parent=0 // pred_check_branch
    %31 = sbr.rel (0) target = $region21
  $region20: #{vae_forward.1} parent=0 // pred_region
    _
  $region21: #{vae_forward.1} parent=0 // pred_fallthru
    _
  // Predicated region
  $region22: #{vae_forward.1} parent=0 // pred_check
    _
  $region23: #{vae_forward.1} parent=0 // pred_check_branch
    %33 = sbr.rel (0) target = $region25
  $region24: #{vae_forward.1} parent=0 // pred_region
    _
  $region25: #{vae_forward.1} parent=0 // pred_fallthru
    _
  // Predicated region
  $region26: #{vae_forward.1} parent=0 // pred_check
    _
  $region27: #{vae_forward.1} parent=0 // pred_check_branch
    %35 = sbr.rel (0) target = $region29
  $region28: #{vae_forward.1} parent=0 // pred_region
    _
  $region29: #{vae_forward.1} parent=0 // pred_fallthru
    _
  // Predicated region
  $region30: #{vae_forward.1} parent=0 // pred_check
    _
  $region31: #{vae_forward.1} parent=0 // pred_check_branch
    %37 = sbr.rel (0) target = $region33
  $region32: #{vae_forward.1} parent=0 // pred_region
    _
  $region33: #{vae_forward.1} parent=0 // pred_fallthru
    _
  // Predicated region
  $region34: #{vae_forward.1} parent=0 // pred_check
    _
  $region35: #{vae_forward.1} parent=0 // pred_check_branch
    %39 = sbr.rel (0) target = $region37
  $region36: #{vae_forward.1} parent=0 // pred_region
    _
  $region37: #{vae_forward.1} parent=0 // pred_fallthru
    _
  // Predicated region
  $region38: #{vae_forward.1} parent=0 // pred_check
    _
  $region39: #{vae_forward.1} parent=0 // pred_check_branch
    %41 = sbr.rel (0) target = $region41
  $region40: #{vae_forward.1} parent=0 // pred_region
    _
  $region41: #{vae_forward.1} parent=0 // pred_fallthru
    _
  // Predicated region
  $region42: #{vae_forward.1} parent=0 // pred_check
    _
  $region43: #{vae_forward.1} parent=0 // pred_check_branch
    %43 = sbr.rel (0) target = $region45
  $region44: #{vae_forward.1} parent=0 // pred_region
    _
  $region45: #{vae_forward.1} parent=0 // pred_fallthru
    _
  // Predicated region
  $region46: #{vae_forward.1} parent=0 // pred_check
    _
  $region47: #{vae_forward.1} parent=0 // pred_check_branch
    %45 = sbr.rel (0) target = $region49
  $region48: #{vae_forward.1} parent=0 // pred_region
    _
  $region49: #{vae_forward.1} parent=0 // pred_fallthru
    _
  // Predicated region
  $region50: #{vae_forward.1} parent=0 // pred_check
    _
  $region51: #{vae_forward.1} parent=0 // pred_check_branch
    %47 = sbr.rel (0) target = $region53
  $region52: #{vae_forward.1} parent=0 // pred_region
    _
  $region53: #{vae_forward.1} parent=0 // pred_fallthru
    _
  // Predicated region
  $region54: #{vae_forward.1} parent=0 // pred_check
    _
  $region55: #{vae_forward.1} parent=0 // pred_check_branch
    %49 = sbr.rel (0) target = $region57
  $region56: #{vae_forward.1} parent=0 // pred_region
    _
  $region57: #{vae_forward.1} parent=0 // pred_fallthru
    _
  %v51 = vld [vmem:[%s0] sm:$0xf]
  %v52 = vld [vmem:[%s0 + $0x4] sm:$0xf]
  %v53 = vld [vmem:[%s2] sm:$0xf]
  %v54 = vld [vmem:[%s2 + $0x4] sm:$0xf]
  %v55 = vld [vmem:[%s2 + $0x8] sm:$0xf]
  %v56 = vld [vmem:[%s2 + $0xc] sm:$0xf]
  %v57 = vld [vmem:[%s3] sm:$0x1]
  %v59 = vlaneseq
  %v60 = vshrl.u32 %v59, 7
  %v61 = vsub.s32 0, %v60
  %v62 = vrot.slane %v57, %v61
  %v66 = vunpack.c.l.b16 %v51
  %v67 = vunpack.c.l.b16 %v52
  %v68 = vpack.c.b16 %v67, %v66
  %v73 = vunpack.c.l.b16 %v53
  %v74 = vunpack.c.l.b16 %v54
  %v75 = vunpack.c.l.b16 %v55
  %v76 = vunpack.c.l.b16 %v56
  %v77 = vpack.c.b16 %v74, %v73
  %v78 = vpack.c.b16 %v76, %v75
  %vm81 = vcmask 261120
  %v83 = vsel %vm81, %v68, 0
  %85 = vmatprep.subr.bf16.mxu0 0
  %86 = vmatpush1.bf16.msra.mxu0 %v77
  %87 = vmatprep.subr.bf16.mxu0 0
  %88 = vmatpush1.bf16.msra.mxu0 %v78
  %89 = vmatprep.subr.bf16.mxu0 0
  %90 = vmatpush1.bf16.msra.mxu0 0
  %91 = vmatprep.subr.bf16.mxu0 0
  %92 = vmatpush1.bf16.msra.mxu0 0
  %93 = vmatprep.subr.bf16.mxu0 0
  %94 = vmatpush1.bf16.msra.mxu0 0
  %95 = vmatprep.subr.bf16.mxu0 0
  %96 = vmatpush1.bf16.msra.mxu0 0
  %97 = vmatprep.subr.bf16.mxu0 0
  %98 = vmatpush1.bf16.msra.mxu0 0
  %99 = vmatprep.subr.bf16.mxu0 0
  %100 = vmatpush1.bf16.msra.mxu0 0
  %101 = vmatprep.subr.bf16.mxu0 0
  %102 = vmatpush1.bf16.msra.mxu0 0
  %103 = vmatprep.subr.bf16.mxu0 0
  %104 = vmatpush1.bf16.msra.mxu0 0
  %105 = vmatprep.subr.bf16.mxu0 0
  %106 = vmatpush1.bf16.msra.mxu0 0
  %107 = vmatprep.subr.bf16.mxu0 0
  %108 = vmatpush1.bf16.msra.mxu0 0
  %109 = vmatprep.subr.bf16.mxu0 0
  %110 = vmatpush1.bf16.msra.mxu0 0
  %111 = vmatprep.subr.bf16.mxu0 0
  %112 = vmatpush1.bf16.msra.mxu0 0
  %113 = vmatprep.subr.bf16.mxu0 0
  %114 = vmatpush1.bf16.msra.mxu0 0
  %115 = vmatprep.subr.bf16.mxu0 0
  %116 = vmatpush1.bf16.msra.mxu0 0
  %117 = vmatprep.mubr.bf16.mxu0 0
  %118 = vmatmul.mubr.bf16.gmra.mrb[0].mxu0 %v83
  %v119 = vpop.f32.mrb[0].mxu0
  %v120 = vadd.f32 %v62, %v119
  %v121 = vpop.f32.mrb[0].mxu0
  %v122 = vpop.f32.mrb[0].mxu0
  %v123 = vadd.f32 %v62, %v122
  %v124 = vpop.f32.mrb[0].mxu0
  %125 = vdwg.mxu0
  %v126 = vmax.f32 %v120, 0.0
  %v127 = vmax.f32 %v123, 0.0
  %v128 = vpack.c.bf16 %v127, %v126
  %v129 = vld [vmem:[%s4] sm:$0xf]
  %v130 = vld [vmem:[%s4 + $0x4] sm:$0xf]
  %v131 = vld [vmem:[%s4 + $0x8] sm:$0xf]
  %v132 = vld [vmem:[%s4 + $0xc] sm:$0xf]
  %v133 = vld [vmem:[%s4 + $0x10] sm:$0xf]
  %v134 = vld [vmem:[%s4 + $0x14] sm:$0xf]
  %v135 = vld [vmem:[%s4 + $0x18] sm:$0xf]
  %v136 = vld [vmem:[%s4 + $0x1c] sm:$0xf]
  %v137 = vld [vmem:[%s4 + $0x20] sm:$0xf]
  %v138 = vld [vmem:[%s4 + $0x24] sm:$0xf]
  %v139 = vld [vmem:[%s4 + $0x28] sm:$0xf]
  %v140 = vld [vmem:[%s4 + $0x2c] sm:$0xf]
  %v141 = vld [vmem:[%s4 + $0x30] sm:$0xf]
  %v142 = vld [vmem:[%s4 + $0x34] sm:$0xf]
  %v143 = vld [vmem:[%s4 + $0x38] sm:$0xf]
  %v144 = vld [vmem:[%s4 + $0x3c] sm:$0xf]
  %v145 = vld [vmem:[%s5] sm:$0x1]
  %v147 = vlaneseq
  %v148 = vshrl.u32 %v147, 7
  %v149 = vsub.s32 0, %v148
  %v150 = vrot.slane %v145, %v149
  %v168 = vunpack.c.l.b16 %v129
  %v169 = vunpack.c.l.b16 %v130
  %v170 = vunpack.c.l.b16 %v131
  %v171 = vunpack.c.l.b16 %v132
  %v172 = vunpack.c.l.b16 %v133
  %v173 = vunpack.c.l.b16 %v134
  %v174 = vunpack.c.l.b16 %v135
  %v175 = vunpack.c.l.b16 %v136
  %v176 = vunpack.c.l.b16 %v137
  %v177 = vunpack.c.l.b16 %v138
  %v178 = vunpack.c.l.b16 %v139
  %v179 = vunpack.c.l.b16 %v140
  %v180 = vunpack.c.l.b16 %v141
  %v181 = vunpack.c.l.b16 %v142
  %v182 = vunpack.c.l.b16 %v143
  %v183 = vunpack.c.l.b16 %v144
  %v184 = vpack.c.b16 %v169, %v168
  %v185 = vpack.c.b16 %v171, %v170
  %v186 = vpack.c.b16 %v173, %v172
  %v187 = vpack.c.b16 %v175, %v174
  %v188 = vpack.c.b16 %v177, %v176
  %v189 = vpack.c.b16 %v179, %v178
  %v190 = vpack.c.b16 %v181, %v180
  %v191 = vpack.c.b16 %v183, %v182
  %200 = vmatprep.subr.bf16.mxu0 0
  %201 = vmatpush1.bf16.msra.mxu0 %v184
  %202 = vmatprep.subr.bf16.mxu0 0
  %203 = vmatpush1.bf16.msra.mxu0 %v185
  %204 = vmatprep.subr.bf16.mxu0 0
  %205 = vmatpush1.bf16.msra.mxu0 %v186
  %206 = vmatprep.subr.bf16.mxu0 0
  %207 = vmatpush1.bf16.msra.mxu0 %v187
  %208 = vmatprep.subr.bf16.mxu0 0
  %209 = vmatpush1.bf16.msra.mxu0 %v188
  %210 = vmatprep.subr.bf16.mxu0 0
  %211 = vmatpush1.bf16.msra.mxu0 %v189
  %212 = vmatprep.subr.bf16.mxu0 0
  %213 = vmatpush1.bf16.msra.mxu0 %v190
  %214 = vmatprep.subr.bf16.mxu0 0
  %215 = vmatpush1.bf16.msra.mxu0 %v191
  %216 = vmatprep.subr.bf16.mxu0 0
  %217 = vmatpush1.bf16.msra.mxu0 0
  %218 = vmatprep.subr.bf16.mxu0 0
  %219 = vmatpush1.bf16.msra.mxu0 0
  %220 = vmatprep.subr.bf16.mxu0 0
  %221 = vmatpush1.bf16.msra.mxu0 0
  %222 = vmatprep.subr.bf16.mxu0 0
  %223 = vmatpush1.bf16.msra.mxu0 0
  %224 = vmatprep.subr.bf16.mxu0 0
  %225 = vmatpush1.bf16.msra.mxu0 0
  %226 = vmatprep.subr.bf16.mxu0 0
  %227 = vmatpush1.bf16.msra.mxu0 0
  %228 = vmatprep.subr.bf16.mxu0 0
  %229 = vmatpush1.bf16.msra.mxu0 0
  %230 = vmatprep.subr.bf16.mxu0 0
  %231 = vmatpush1.bf16.msra.mxu0 0
  %232 = vmatprep.mubr.bf16.mxu0 0
  %233 = vmatmul.mubr.bf16.gmra.mrb[0].mxu0 %v128
  %v234 = vpop.f32.mrb[0].mxu0
  %v235 = vadd.f32 %v150, %v234
  %v236 = vpop.f32.mrb[0].mxu0
  %v237 = vpop.f32.mrb[0].mxu0
  %v238 = vadd.f32 %v150, %v237
  %v239 = vpop.f32.mrb[0].mxu0
  %240 = vdwg.mxu0
  %v241 = vmax.f32 %v235, 0.0
  %v242 = vmax.f32 %v238, 0.0
  %v243 = vpack.c.bf16 %v242, %v241
  %v244 = vld [vmem:[%s6] sm:$0xf]
  %v245 = vld [vmem:[%s6 + $0x4] sm:$0xf]
  %v246 = vld [vmem:[%s6 + $0x8] sm:$0xf]
  %v247 = vld [vmem:[%s6 + $0xc] sm:$0xf]
  %v248 = vld [vmem:[%s6 + $0x10] sm:$0xf]
  %v249 = vld [vmem:[%s6 + $0x14] sm:$0xf]
  %v250 = vld [vmem:[%s6 + $0x18] sm:$0xf]
  %v251 = vld [vmem:[%s6 + $0x1c] sm:$0xf]
  %v252 = vld [vmem:[%s7] sm:$0x1]
  %v254 = vlaneseq
  %v255 = vshrl.u32 %v254, 7
  %v256 = vsub.s32 0, %v255
  %v257 = vrot.slane %v252, %v256
  %v267 = vunpack.c.l.b16 %v244
  %v268 = vunpack.c.l.b16 %v245
  %v269 = vunpack.c.l.b16 %v246
  %v270 = vunpack.c.l.b16 %v247
  %v271 = vunpack.c.l.b16 %v248
  %v272 = vunpack.c.l.b16 %v249
  %v273 = vunpack.c.l.b16 %v250
  %v274 = vunpack.c.l.b16 %v251
  %v275 = vpack.c.b16 %v268, %v267
  %v276 = vpack.c.b16 %v270, %v269
  %v277 = vpack.c.b16 %v272, %v271
  %v278 = vpack.c.b16 %v274, %v273
  %vm283 = vcmask 523264
  %v285 = vsel %vm283, %v243, 0
  %287 = vmatprep.subr.bf16.mxu0 0
  %288 = vmatpush1.bf16.msra.mxu0 %v275
  %289 = vmatprep.subr.bf16.mxu0 0
  %290 = vmatpush1.bf16.msra.mxu0 %v276
  %291 = vmatprep.subr.bf16.mxu0 0
  %292 = vmatpush1.bf16.msra.mxu0 %v277
  %293 = vmatprep.subr.bf16.mxu0 0
  %294 = vmatpush1.bf16.msra.mxu0 %v278
  %295 = vmatprep.subr.bf16.mxu0 0
  %296 = vmatpush1.bf16.msra.mxu0 0
  %297 = vmatprep.subr.bf16.mxu0 0
  %298 = vmatpush1.bf16.msra.mxu0 0
  %299 = vmatprep.subr.bf16.mxu0 0
  %300 = vmatpush1.bf16.msra.mxu0 0
  %301 = vmatprep.subr.bf16.mxu0 0
  %302 = vmatpush1.bf16.msra.mxu0 0
  %303 = vmatprep.subr.bf16.mxu0 0
  %304 = vmatpush1.bf16.msra.mxu0 0
  %305 = vmatprep.subr.bf16.mxu0 0
  %306 = vmatpush1.bf16.msra.mxu0 0
  %307 = vmatprep.subr.bf16.mxu0 0
  %308 = vmatpush1.bf16.msra.mxu0 0
  %309 = vmatprep.subr.bf16.mxu0 0
  %310 = vmatpush1.bf16.msra.mxu0 0
  %311 = vmatprep.subr.bf16.mxu0 0
  %312 = vmatpush1.bf16.msra.mxu0 0
  %313 = vmatprep.subr.bf16.mxu0 0
  %314 = vmatpush1.bf16.msra.mxu0 0
  %315 = vmatprep.subr.bf16.mxu0 0
  %316 = vmatpush1.bf16.msra.mxu0 0
  %317 = vmatprep.subr.bf16.mxu0 0
  %318 = vmatpush1.bf16.msra.mxu0 0
  %319 = vmatprep.mubr.bf16.mxu0 0
  %320 = vmatmul.mubr.bf16.gmra.mrb[0].mxu0 %v285
  %v321 = vpop.f32.mrb[0].mxu0
  %v322 = vadd.f32 %v257, %v321
  %v323 = vpop.f32.mrb[0].mxu0
  %v324 = vpop.f32.mrb[0].mxu0
  %v325 = vadd.f32 %v257, %v324
  %v326 = vpop.f32.mrb[0].mxu0
  %327 = vdwg.mxu0
  %v328 = vmul.f32 %v322, 0.5
  %v329 = vmul.f32 %v325, 0.5
  %v330 = vmul.f32 %v328, 1.442695
  %v331 = vpow.pop %v330
  %v332 = vmul.f32 %v329, 1.442695
  %v333 = vpow.pop %v332
  %v334 = vld [vmem:[%s1] sm:$0xff]
  %v335 = vld [vmem:[%s1 + $0x8] sm:$0xff]
  %338 = vrot.lane.b32.xlu0 %v331, 64
  %v339 = vpop.permute.xlu0 %338
  %340 = vrot.lane.b32.xlu0 %v333, 64
  %v341 = vpop.permute.xlu0 %340
  %v344 = vmul.f32 %v334, %v339
  %v345 = vmul.f32 %v335, %v341
  %v346 = vadd.f32 %v322, %v344
  %v347 = vadd.f32 %v325, %v345
  %v348 = vpack.c.bf16 %v347, %v346
  %v349 = vld [vmem:[%s8] sm:$0xf]
  %v350 = vld [vmem:[%s8 + $0x4] sm:$0xf]
  %v351 = vld [vmem:[%s8 + $0x8] sm:$0xf]
  %v352 = vld [vmem:[%s8 + $0xc] sm:$0xf]
  %v353 = vld [vmem:[%s8 + $0x10] sm:$0xf]
  %v354 = vld [vmem:[%s8 + $0x14] sm:$0xf]
  %v355 = vld [vmem:[%s8 + $0x18] sm:$0xf]
  %v356 = vld [vmem:[%s8 + $0x1c] sm:$0xf]
  %v357 = vld [vmem:[%s9] sm:$0x1]
  %v359 = vlaneseq
  %v360 = vshrl.u32 %v359, 7
  %v361 = vsub.s32 0, %v360
  %v362 = vrot.slane %v357, %v361
  %v372 = vunpack.c.l.b16 %v349
  %v373 = vunpack.c.l.b16 %v350
  %v374 = vunpack.c.l.b16 %v351
  %v375 = vunpack.c.l.b16 %v352
  %v376 = vunpack.c.l.b16 %v353
  %v377 = vunpack.c.l.b16 %v354
  %v378 = vunpack.c.l.b16 %v355
  %v379 = vunpack.c.l.b16 %v356
  %v380 = vpack.c.b16 %v373, %v372
  %v381 = vpack.c.b16 %v375, %v374
  %v382 = vpack.c.b16 %v377, %v376
  %v383 = vpack.c.b16 %v379, %v378
  %v389 = vsel %vm283, %v348, 0
  %391 = vmatprep.subr.bf16.mxu0 0
  %392 = vmatpush1.bf16.msra.mxu0 %v380
  %393 = vmatprep.subr.bf16.mxu0 0
  %394 = vmatpush1.bf16.msra.mxu0 %v381
  %395 = vmatprep.subr.bf16.mxu0 0
  %396 = vmatpush1.bf16.msra.mxu0 %v382
  %397 = vmatprep.subr.bf16.mxu0 0
  %398 = vmatpush1.bf16.msra.mxu0 %v383
  %399 = vmatprep.subr.bf16.mxu0 0
  %400 = vmatpush1.bf16.msra.mxu0 0
  %401 = vmatprep.subr.bf16.mxu0 0
  %402 = vmatpush1.bf16.msra.mxu0 0
  %403 = vmatprep.subr.bf16.mxu0 0
  %404 = vmatpush1.bf16.msra.mxu0 0
  %405 = vmatprep.subr.bf16.mxu0 0
  %406 = vmatpush1.bf16.msra.mxu0 0
  %407 = vmatprep.subr.bf16.mxu0 0
  %408 = vmatpush1.bf16.msra.mxu0 0
  %409 = vmatprep.subr.bf16.mxu0 0
  %410 = vmatpush1.bf16.msra.mxu0 0
  %411 = vmatprep.subr.bf16.mxu0 0
  %412 = vmatpush1.bf16.msra.mxu0 0
  %413 = vmatprep.subr.bf16.mxu0 0
  %414 = vmatpush1.bf16.msra.mxu0 0
  %415 = vmatprep.subr.bf16.mxu0 0
  %416 = vmatpush1.bf16.msra.mxu0 0
  %417 = vmatprep.subr.bf16.mxu0 0
  %418 = vmatpush1.bf16.msra.mxu0 0
  %419 = vmatprep.subr.bf16.mxu0 0
  %420 = vmatpush1.bf16.msra.mxu0 0
  %421 = vmatprep.subr.bf16.mxu0 0
  %422 = vmatpush1.bf16.msra.mxu0 0
  %423 = vmatprep.mubr.bf16.mxu0 0
  %424 = vmatmul.mubr.bf16.gmra.mrb[0].mxu0 %v389
  %v425 = vpop.f32.mrb[0].mxu0
  %v426 = vadd.f32 %v362, %v425
  %v427 = vpop.f32.mrb[0].mxu0
  %v428 = vpop.f32.mrb[0].mxu0
  %v429 = vadd.f32 %v362, %v428
  %v430 = vpop.f32.mrb[0].mxu0
  %431 = vdwg.mxu0
  %v432 = vmax.f32 %v426, 0.0
  %v433 = vmax.f32 %v429, 0.0
  %v434 = vpack.c.bf16 %v433, %v432
  %v435 = vld [vmem:[%s10] sm:$0xf]
  %v436 = vld [vmem:[%s10 + $0x4] sm:$0xf]
  %v437 = vld [vmem:[%s10 + $0x8] sm:$0xf]
  %v438 = vld [vmem:[%s10 + $0xc] sm:$0xf]
  %v439 = vld [vmem:[%s10 + $0x10] sm:$0xf]
  %v440 = vld [vmem:[%s10 + $0x14] sm:$0xf]
  %v441 = vld [vmem:[%s10 + $0x18] sm:$0xf]
  %v442 = vld [vmem:[%s10 + $0x1c] sm:$0xf]
  %v443 = vld [vmem:[%s11] sm:$0x1]
  %v445 = vlaneseq
  %v446 = vshrl.u32 %v445, 7
  %v447 = vsub.s32 0, %v446
  %v448 = vrot.slane %v443, %v447
  %v458 = vunpack.c.l.b16 %v435
  %v459 = vunpack.c.l.b16 %v436
  %v460 = vunpack.c.l.b16 %v437
  %v461 = vunpack.c.l.b16 %v438
  %v462 = vunpack.c.l.b16 %v439
  %v463 = vunpack.c.l.b16 %v440
  %v464 = vunpack.c.l.b16 %v441
  %v465 = vunpack.c.l.b16 %v442
  %v466 = vpack.c.b16 %v459, %v458
  %v467 = vpack.c.b16 %v461, %v460
  %v468 = vpack.c.b16 %v463, %v462
  %v469 = vpack.c.b16 %v465, %v464
  %v475 = vsel %vm283, %v434, 0
  %477 = vmatprep.subr.bf16.mxu0 0
  %478 = vmatpush1.bf16.msra.mxu0 %v466
  %479 = vmatprep.subr.bf16.mxu0 0
  %480 = vmatpush1.bf16.msra.mxu0 %v467
  %481 = vmatprep.subr.bf16.mxu0 0
  %482 = vmatpush1.bf16.msra.mxu0 %v468
  %483 = vmatprep.subr.bf16.mxu0 0
  %484 = vmatpush1.bf16.msra.mxu0 %v469
  %485 = vmatprep.subr.bf16.mxu0 0
  %486 = vmatpush1.bf16.msra.mxu0 0
  %487 = vmatprep.subr.bf16.mxu0 0
  %488 = vmatpush1.bf16.msra.mxu0 0
  %489 = vmatprep.subr.bf16.mxu0 0
  %490 = vmatpush1.bf16.msra.mxu0 0
  %491 = vmatprep.subr.bf16.mxu0 0
  %492 = vmatpush1.bf16.msra.mxu0 0
  %493 = vmatprep.subr.bf16.mxu0 0
  %494 = vmatpush1.bf16.msra.mxu0 0
  %495 = vmatprep.subr.bf16.mxu0 0
  %496 = vmatpush1.bf16.msra.mxu0 0
  %497 = vmatprep.subr.bf16.mxu0 0
  %498 = vmatpush1.bf16.msra.mxu0 0
  %499 = vmatprep.subr.bf16.mxu0 0
  %500 = vmatpush1.bf16.msra.mxu0 0
  %501 = vmatprep.subr.bf16.mxu0 0
  %502 = vmatpush1.bf16.msra.mxu0 0
  %503 = vmatprep.subr.bf16.mxu0 0
  %504 = vmatpush1.bf16.msra.mxu0 0
  %505 = vmatprep.subr.bf16.mxu0 0
  %506 = vmatpush1.bf16.msra.mxu0 0
  %507 = vmatprep.subr.bf16.mxu0 0
  %508 = vmatpush1.bf16.msra.mxu0 0
  %509 = vmatprep.mubr.bf16.mxu0 0
  %510 = vmatmul.mubr.bf16.gmra.mrb[0].mxu0 %v475
  %v511 = vpop.f32.mrb[0].mxu0
  %v512 = vadd.f32 %v448, %v511
  %v513 = vpop.f32.mrb[0].mxu0
  %v514 = vpop.f32.mrb[0].mxu0
  %v515 = vadd.f32 %v448, %v514
  %v516 = vpop.f32.mrb[0].mxu0
  %517 = vdwg.mxu0
  %v518 = vmax.f32 %v512, 0.0
  %v519 = vmax.f32 %v515, 0.0
  %v520 = vpack.c.bf16 %v519, %v518
  %v521 = vld [vmem:[%s12] sm:$0xf]
  %v522 = vld [vmem:[%s12 + $0x4] sm:$0xf]
  %v523 = vld [vmem:[%s12 + $0x8] sm:$0xf]
  %v524 = vld [vmem:[%s12 + $0xc] sm:$0xf]
  %v525 = vld [vmem:[%s12 + $0x10] sm:$0xf]
  %v526 = vld [vmem:[%s12 + $0x14] sm:$0xf]
  %v527 = vld [vmem:[%s12 + $0x18] sm:$0xf]
  %v528 = vld [vmem:[%s12 + $0x1c] sm:$0xf]
  %v529 = vld [vmem:[%s12 + $0x20] sm:$0xf]
  %v530 = vld [vmem:[%s12 + $0x24] sm:$0xf]
  %v531 = vld [vmem:[%s12 + $0x28] sm:$0xf]
  %v532 = vld [vmem:[%s12 + $0x2c] sm:$0xf]
  %v533 = vld [vmem:[%s12 + $0x30] sm:$0xf]
  %v534 = vld [vmem:[%s12 + $0x34] sm:$0xf]
  %v535 = vld [vmem:[%s12 + $0x38] sm:$0xf]
  %v536 = vld [vmem:[%s12 + $0x3c] sm:$0xf]
  %v537 = vld [vmem:[%s13] sm:$0x1]
  %v539 = vlaneseq
  %v540 = vshrl.u32 %v539, 7
  %v541 = vsub.s32 0, %v540
  %v542 = vrot.slane %v537, %v541
  %v560 = vunpack.c.l.b16 %v521
  %v561 = vunpack.c.l.b16 %v522
  %v562 = vunpack.c.l.b16 %v523
  %v563 = vunpack.c.l.b16 %v524
  %v564 = vunpack.c.l.b16 %v525
  %v565 = vunpack.c.l.b16 %v526
  %v566 = vunpack.c.l.b16 %v527
  %v567 = vunpack.c.l.b16 %v528
  %v568 = vunpack.c.l.b16 %v529
  %v569 = vunpack.c.l.b16 %v530
  %v570 = vunpack.c.l.b16 %v531
  %v571 = vunpack.c.l.b16 %v532
  %v572 = vunpack.c.l.b16 %v533
  %v573 = vunpack.c.l.b16 %v534
  %v574 = vunpack.c.l.b16 %v535
  %v575 = vunpack.c.l.b16 %v536
  %v576 = vpack.c.b16 %v561, %v560
  %v577 = vpack.c.b16 %v563, %v562
  %v578 = vpack.c.b16 %v565, %v564
  %v579 = vpack.c.b16 %v567, %v566
  %v580 = vpack.c.b16 %v569, %v568
  %v581 = vpack.c.b16 %v571, %v570
  %v582 = vpack.c.b16 %v573, %v572
  %v583 = vpack.c.b16 %v575, %v574
  %592 = vmatprep.subr.bf16.mxu0 0
  %593 = vmatpush1.bf16.msra.mxu0 %v576
  %594 = vmatprep.subr.bf16.mxu0 0
  %595 = vmatpush1.bf16.msra.mxu0 %v577
  %596 = vmatprep.subr.bf16.mxu0 0
  %597 = vmatpush1.bf16.msra.mxu0 %v578
  %598 = vmatprep.subr.bf16.mxu0 0
  %599 = vmatpush1.bf16.msra.mxu0 %v579
  %600 = vmatprep.subr.bf16.mxu0 0
  %601 = vmatpush1.bf16.msra.mxu0 %v580
  %602 = vmatprep.subr.bf16.mxu0 0
  %603 = vmatpush1.bf16.msra.mxu0 %v581
  %604 = vmatprep.subr.bf16.mxu0 0
  %605 = vmatpush1.bf16.msra.mxu0 %v582
  %606 = vmatprep.subr.bf16.mxu0 0
  %607 = vmatpush1.bf16.msra.mxu0 %v583
  %608 = vmatprep.subr.bf16.mxu0 0
  %609 = vmatpush1.bf16.msra.mxu0 0
  %610 = vmatprep.subr.bf16.mxu0 0
  %611 = vmatpush1.bf16.msra.mxu0 0
  %612 = vmatprep.subr.bf16.mxu0 0
  %613 = vmatpush1.bf16.msra.mxu0 0
  %614 = vmatprep.subr.bf16.mxu0 0
  %615 = vmatpush1.bf16.msra.mxu0 0
  %616 = vmatprep.subr.bf16.mxu0 0
  %617 = vmatpush1.bf16.msra.mxu0 0
  %618 = vmatprep.subr.bf16.mxu0 0
  %619 = vmatpush1.bf16.msra.mxu0 0
  %620 = vmatprep.subr.bf16.mxu0 0
  %621 = vmatpush1.bf16.msra.mxu0 0
  %622 = vmatprep.subr.bf16.mxu0 0
  %623 = vmatpush1.bf16.msra.mxu0 0
  %624 = vmatprep.mubr.bf16.mxu0 0
  %625 = vmatmul.mubr.bf16.gmra.mrb[0].mxu0 %v520
  %v626 = vpop.f32.mrb[0].mxu0
  %v627 = vadd.f32 %v542, %v626
  %v628 = vpop.f32.mrb[0].mxu0
  %v629 = vpop.f32.mrb[0].mxu0
  %v630 = vadd.f32 %v542, %v629
  %v631 = vpop.f32.mrb[0].mxu0
  %632 = vdwg.mxu0
  %v633 = vpack.c.bf16 %v630, %v627
  %v635 = vunpack.c.l.b16 %v633
  %v636 = vunpack.c.h.b16 %v633
  %v637 = vpack.c.b16 %v635, %v635
  %v638 = vpack.c.b16 %v636, %v636
  %vm641 = vcmask 257024
  %642 = vst.msk [vmem:[%s14] sm:$0xf] %vm641, %v637
  %643 = vst.msk [vmem:[%s14 + $0x4] sm:$0xf] %vm641, %v638
  %v644 = vpack.c.bf16 %v325, %v322
  %v646 = vunpack.c.l.b16 %v644
  %v647 = vunpack.c.h.b16 %v644
  %v648 = vpack.c.b16 %v646, %v646
  %v649 = vpack.c.b16 %v647, %v647
  %vm652 = vcmask 519168
  %653 = vst.msk [vmem:[%s15] sm:$0xf] %vm652, %v648
  %654 = vst.msk [vmem:[%s15 + $0x4] sm:$0xf] %vm652, %v649
  %655 = vrot.lane.b32.xlu0 %v648, 64
  %v656 = vpop.permute.xlu0 %655
  %657 = vrot.lane.b32.xlu0 %v649, 64
  %v658 = vpop.permute.xlu0 %657
  %661 = vst.msk [vmem:[%s16] sm:$0xf] %vm652, %v656
  %662 = vst.msk [vmem:[%s16 + $0x4] sm:$0xf] %vm652, %v658
  // Predicated region
  $region58: #{vae_forward.1} parent=0 // pred_check
    _
  $region59: #{vae_forward.1} parent=0 // pred_check_branch
    %664 = sbr.rel (0) target = $region61
  $region60: #{vae_forward.1} parent=0 // pred_region
    _
  $region61: #{vae_forward.1} parent=0 // pred_fallthru
    _
  // Predicated region
  $region62: #{vae_forward.1} parent=0 // pred_check
    _
  $region63: #{vae_forward.1} parent=0 // pred_check_branch
    %666 = sbr.rel (0) target = $region65
  $region64: #{vae_forward.1} parent=0 // pred_region
    _
  $region65: #{vae_forward.1} parent=0 // pred_fallthru
    _
  // Predicated region
  $region66: #{vae_forward.1} parent=0 // pred_check
    _
  $region67: #{vae_forward.1} parent=0 // pred_check_branch
    %668 = sbr.rel (0) target = $region69
  $region68: #{vae_forward.1} parent=0 // pred_region
    _
  $region69: #{vae_forward.1} parent=0 // pred_fallthru
    _
  // Predicated region
  $region70: #{vae_forward.1} parent=0 // pred_check
    _
  $region71: #{vae_forward.1} parent=0 // pred_check_branch
    %670 = sbr.rel (0) target = $region73
  $region72: #{vae_forward.1} parent=0 // pred_region
    _
  $region73: #{vae_forward.1} parent=0 // pred_fallthru
    _
  // Predicated region
  $region74: #{vae_forward.1} parent=0 // pred_check
    _
  $region75: #{vae_forward.1} parent=0 // pred_check_branch
    %672 = sbr.rel (0) target = $region77
  $region76: #{vae_forward.1} parent=0 // pred_region
    _
  $region77: #{vae_forward.1} parent=0 // pred_fallthru
    _
  // Predicated region
  $region78: #{vae_forward.1} parent=0 // pred_check
    _
  $region79: #{vae_forward.1} parent=0 // pred_check_branch
    %674 = sbr.rel (0) target = $region81
  $region80: #{vae_forward.1} parent=0 // pred_region
    _
  $region81: #{vae_forward.1} parent=0 // pred_fallthru
    _

</llo_original>
